<compile_context>
chip_gen: v7x
topology: tpu7x:2x2x1
jax: 0.10.0
libtpu: 0.0.40
codegen_flags: <defaults>
</compile_context>

<pallas_src>
import functools

import jax
import jax.numpy as jnp
from jax import lax
from jax.experimental import pallas as pl
from jax.experimental.pallas import tpu as pltpu


# ---------------------------------------------------------------------------
# Generation-aware VMEM budgeting.
# ---------------------------------------------------------------------------
def _vmem_budgets():
    """Returns (per-block byte budget for the x+mask+out set, vmem_limit_bytes)."""
    try:
        cap = int(pltpu.get_tpu_info().vmem_capacity_bytes)
    except Exception:
        cap = 64 * 1024 * 1024  # be conservative (v7x per-TC VMEM)
    if cap >= 96 * 1024 * 1024:          # v5e / v6e: 128 MiB physical VMEM
        return 8 * 1024 * 1024, 80 * 1024 * 1024
    # v7x: 64 MiB per TensorCore — leave headroom for the ~4-5 block-sized f32
    # temporaries (xf, mf, xm, d, out) the fused kernel materializes, plus the
    # double-buffered input/output blocks.
    return 6 * 1024 * 1024, 40 * 1024 * 1024


def _sublane_multiple(dtype):
    # f32 -> 8, bf16 -> 16, int8/uint8 -> 32
    return 8 * (4 // jnp.dtype(dtype).itemsize)


def _pick_tile_c(C, N, HW, dtypes, budget):
    """tile_c for the fused one-pass path (divisor of C), or None if even a
    minimal channel block exceeds the budget -> use the two-pass path."""
    per_chan = N * HW * sum(jnp.dtype(d).itemsize for d in dtypes)
    align = max(_sublane_multiple(d) for d in dtypes)
    max_tc = budget // max(1, per_chan)
    if C % align == 0 and C >= 2 * align and max_tc >= align:
        # Cap at C//2 so the grid has >= 2 steps (pipelining + v7x megacore).
        cap = min(max_tc, C // 2)
        tc = (cap // align) * align
        while tc >= align:
            if C % tc == 0:
                return tc
            tc -= align
    if C * per_chan <= budget:
        return C  # C too small / unaligned to tile; single block still fits.
    return None   # fused path cannot hold a channel block -> two-pass path.


def _largest_hw_tile(HW, max_elems):
    """Largest multiple of 128 dividing HW that is <= max_elems (>= 128)."""
    if HW % 128 != 0:
        # TODO(synk): pad/mask the spatial axis when H*W is not 128-divisible
        # instead of falling back to a full-HW block.
        return HW
    base = HW // 128
    best = 128
    for k in range(1, base + 1):
        if base % k == 0 and k * 128 <= max_elems:
            best = k * 128
    return best


# ---------------------------------------------------------------------------
# Fused one-pass kernel (stats + normalize in a single HBM pass).
# ---------------------------------------------------------------------------
def _rbn_fused_kernel(eps):
    def kernel(x_ref, m_ref, w_ref, b_ref, o_ref, mean_ref, var_ref):
        # Blocks: x/m/o -> (N, TILE_C, HW);  w/b/mean/var -> (TILE_C, 1)
        xf = x_ref[...].astype(jnp.float32)
        mf = m_ref[...].astype(jnp.float32)   # int8 0/1 mask upcast (exact)
        xm = xf * mf

        def _csum(a):  # (N, tc, HW) -> (1, tc, 1); batch-sum (VALU) first,
            # then one cross-lane (XLU) reduce per channel tile.
            return jnp.sum(jnp.sum(a, axis=0, keepdims=True), axis=2,
                           keepdims=True)

        mask_sum = _csum(mf)
        x_mean = _csum(xm) / mask_sum          # sum(x*m)/sum(m)
        d = xm - x_mean                        # reused for variance and output
        # Binary mask: ((xm - mean)*m)^2 == m * d * d  (m^2 == m).
        x_var = _csum(mf * (d * d)) / mask_sum

        w = w_ref[...].reshape(1, -1, 1).astype(jnp.float32)
        b = b_ref[...].reshape(1, -1, 1).astype(jnp.float32)
        scale = w * lax.rsqrt(x_var + eps)     # one rsqrt per channel
        # out = x_out*m + x*(1-m) = x + m*(x_out - x),  x_out = scale*d + b
        out = xf + mf * (scale * d + b - xf)

        o_ref[...] = out.astype(o_ref.dtype)
        mean_ref[...] = x_mean.reshape(mean_ref.shape).astype(mean_ref.dtype)
        var_ref[...] = x_var.reshape(var_ref.shape).astype(var_ref.dtype)

    return kernel


def _rbn_one_pass(x3, m3, w2, b2, eps, tile_c, vmem_limit):
    N, C, HW = x3.shape
    grid = (C // tile_c,)
    total = N * C * HW
    bpe = 2 * jnp.dtype(x3.dtype).itemsize + jnp.dtype(m3.dtype).itemsize
    cost = pl.CostEstimate(
        flops=int(9 * total),
        transcendentals=int(C),
        bytes_accessed=int(total * bpe + 24 * C),
    )
    return pl.pallas_call(
        _rbn_fused_kernel(eps),
        out_shape=(
            jax.ShapeDtypeStruct((N, C, HW), x3.dtype),
            jax.ShapeDtypeStruct((C, 1), jnp.float32),
            jax.ShapeDtypeStruct((C, 1), jnp.float32),
        ),
        grid=grid,
        in_specs=[
            pl.BlockSpec((N, tile_c, HW), lambda i: (0, i, 0)),
            pl.BlockSpec((N, tile_c, HW), lambda i: (0, i, 0)),
            pl.BlockSpec((tile_c, 1), lambda i: (i, 0)),
            pl.BlockSpec((tile_c, 1), lambda i: (i, 0)),
        ],
        out_specs=(
            pl.BlockSpec((N, tile_c, HW), lambda i: (0, i, 0)),
            pl.BlockSpec((tile_c, 1), lambda i: (i, 0)),
            pl.BlockSpec((tile_c, 1), lambda i: (i, 0)),
        ),
        compiler_params=pltpu.CompilerParams(
            dimension_semantics=("parallel",),
            vmem_limit_bytes=vmem_limit,
        ),
        cost_estimate=cost,
    )(x3, m3, w2, b2)


# ---------------------------------------------------------------------------
# Two-pass sufficient-statistics path (large N*HW fallback).
# ---------------------------------------------------------------------------
def _rbn_stats_kernel(x_ref, m_ref, sm_ref, smx_ref, smx2_ref):
    # Blocks: x/m -> (N, tc, thw);  outputs (accumulators) -> (tc, 1)
    @pl.when(pl.program_id(1) == 0)
    def _():
        sm_ref[...] = jnp.zeros_like(sm_ref)
        smx_ref[...] = jnp.zeros_like(smx_ref)
        smx2_ref[...] = jnp.zeros_like(smx2_ref)

    xf = x_ref[...].astype(jnp.float32)
    mf = m_ref[...].astype(jnp.float32)
    mx = mf * xf

    def _csum(a):  # (N, tc, thw) -> (tc, 1)
        return jnp.sum(jnp.sum(a, axis=0), axis=-1, keepdims=True)

    sm_ref[...] += _csum(mf)
    smx_ref[...] += _csum(mx)
    smx2_ref[...] += _csum(mx * xf)


def _rbn_apply_kernel(eps):
    def kernel(x_ref, m_ref, w_ref, b_ref, mean_ref, var_ref, o_ref):
        xf = x_ref[...].astype(jnp.float32)
        mf = m_ref[...].astype(jnp.float32)
        mean = mean_ref[...].reshape(1, -1, 1)
        scale = (w_ref[...].astype(jnp.float32)
                 * lax.rsqrt(var_ref[...] + eps)).reshape(1, -1, 1)
        b = b_ref[...].astype(jnp.float32).reshape(1, -1, 1)
        d = xf * mf - mean
        o_ref[...] = (xf + mf * (scale * d + b - xf)).astype(o_ref.dtype)

    return kernel


def _rbn_two_pass(x3, m3, w2, b2, eps, budget, vmem_limit):
    N, C, HW = x3.shape
    bpe = 2 * jnp.dtype(x3.dtype).itemsize + jnp.dtype(m3.dtype).itemsize
    align = max(_sublane_multiple(d) for d in (x3.dtype, m3.dtype, x3.dtype))

    # Channel tile: a multiple of the sublane alignment dividing C that still
    # leaves room for at least a 128-wide spatial tile; else the full C.
    if C % align == 0:
        cap = max(align, budget // max(1, N * 128 * bpe))
        tile_c = align
        tc = max(align, (min(cap, C) // align) * align)
        while tc >= align:
            if C % tc == 0:
                tile_c = tc
                break
            tc -= align
    else:
        tile_c = C
    max_hw_elems = max(128, budget // max(1, N * tile_c * bpe))
    tile_hw = _largest_hw_tile(HW, max_hw_elems)
    # TODO(synk): also tile the batch axis if N alone makes an
    # (N, tile_c, 128) block exceed the VMEM budget.
    grid = (C // tile_c, HW // tile_hw)

    total = N * C * HW
    stats_cost = pl.CostEstimate(
        flops=int(5 * total), transcendentals=0,
        bytes_accessed=int(total * (bpe - jnp.dtype(x3.dtype).itemsize) + 12 * C))

    sum_m, sum_mx, sum_mx2 = pl.pallas_call(
        _rbn_stats_kernel,
        out_shape=(
            jax.ShapeDtypeStruct((C, 1), jnp.float32),
            jax.ShapeDtypeStruct((C, 1), jnp.float32),
            jax.ShapeDtypeStruct((C, 1), jnp.float32),
        ),
        grid=grid,
        in_specs=[
            pl.BlockSpec((N, tile_c, tile_hw), lambda i, j: (0, i, j)),
            pl.BlockSpec((N, tile_c, tile_hw), lambda i, j: (0, i, j)),
        ],
        out_specs=(
            pl.BlockSpec((tile_c, 1), lambda i, j: (i, 0)),
            pl.BlockSpec((tile_c, 1), lambda i, j: (i, 0)),
            pl.BlockSpec((tile_c, 1), lambda i, j: (i, 0)),
        ),
        compiler_params=pltpu.CompilerParams(
            dimension_semantics=("parallel", "arbitrary"),
            vmem_limit_bytes=vmem_limit,
        ),
        cost_estimate=stats_cost,
    )(x3, m3)

    # Tiny per-channel math in plain XLA (C elements). Binary mask:
    # var = E_m[x^2] - mean^2.
    mean_c = sum_mx / sum_m
    var_c = jnp.maximum(sum_mx2 / sum_m - mean_c * mean_c, 0.0)

    apply_cost = pl.CostEstimate(
        flops=int(7 * total), transcendentals=int(C),
        bytes_accessed=int(total * bpe + 24 * C))

    out3 = pl.pallas_call(
        _rbn_apply_kernel(eps),
        out_shape=jax.ShapeDtypeStruct((N, C, HW), x3.dtype),
        grid=grid,
        in_specs=[
            pl.BlockSpec((N, tile_c, tile_hw), lambda i, j: (0, i, j)),
            pl.BlockSpec((N, tile_c, tile_hw), lambda i, j: (0, i, j)),
            pl.BlockSpec((tile_c, 1), lambda i, j: (i, 0)),
            pl.BlockSpec((tile_c, 1), lambda i, j: (i, 0)),
            pl.BlockSpec((tile_c, 1), lambda i, j: (i, 0)),
            pl.BlockSpec((tile_c, 1), lambda i, j: (i, 0)),
        ],
        out_specs=pl.BlockSpec((N, tile_c, tile_hw), lambda i, j: (0, i, j)),
        compiler_params=pltpu.CompilerParams(
            dimension_semantics=("parallel", "parallel"),
            vmem_limit_bytes=vmem_limit,
        ),
        cost_estimate=apply_cost,
    )(x3, m3, w2, b2, mean_c, var_c)

    return out3, mean_c, var_c


# ---------------------------------------------------------------------------
# Public forward (training mode).
# ---------------------------------------------------------------------------
def rbn_forward(x_nchw, mask_nchw, weight, bias, running_mean, running_var,
                eps=1e-5, momentum=0.9, *,
                block_budget_bytes=None, force_two_pass=False):
    """Training-mode RBN forward.

    x_nchw: (N, C, H, W); mask_nchw: (N, C, H, W) holding 0/1 (int8 transport
    recommended — it is upcast in-kernel and halves/quarters the mask HBM
    stream). weight/bias/running_mean/running_var: (1, C, 1, 1).
    Returns (out NCHW, new_running_mean, new_running_var).
    """
    N, C, H, W = x_nchw.shape
    HW = H * W

    # Free, contiguous reshapes (no transposes, no extra HBM passes).
    x3 = x_nchw.reshape(N, C, HW)
    m3 = mask_nchw.reshape(N, C, HW)
    w2 = weight.reshape(C, 1)
    b2 = bias.reshape(C, 1)

    budget, vmem_limit = _vmem_budgets()
    if block_budget_bytes is not None:
        budget = int(block_budget_bytes)

    dtypes = (x3.dtype, m3.dtype, x_nchw.dtype)  # x read, mask read, out write
    tile_c = None if force_two_pass else _pick_tile_c(C, N, HW, dtypes, budget)

    if tile_c is not None:
        out3, x_mean, x_var = _rbn_one_pass(x3, m3, w2, b2, eps, tile_c,
                                            vmem_limit)
    else:
        out3, x_mean, x_var = _rbn_two_pass(x3, m3, w2, b2, eps, budget,
                                            vmem_limit)

    out = out3.reshape(N, C, H, W)

    # Running-stat buffers (.mul_/.add_ in PyTorch; functional here).
    x_mean4 = x_mean.reshape(1, C, 1, 1)
    x_var4 = x_var.reshape(1, C, 1, 1)
    new_running_mean = running_mean * momentum + (1.0 - momentum) * x_mean4
    new_running_var = running_var * momentum + (1.0 - momentum) * x_var4
    return out, new_running_mean, new_running_var


def rbn_reference(x, m, weight, bias, eps=1e-5):
    """Pure-JAX reference mirroring the PyTorch training-mode forward."""
    xm = x * m
    mask_mean = jnp.mean(m, axis=(0, 2, 3), keepdims=True)
    x_mean = jnp.mean(xm, axis=(0, 2, 3), keepdims=True) / mask_mean
    x_var = jnp.mean(((xm - x_mean) * m) ** 2, axis=(0, 2, 3),
                     keepdims=True) / mask_mean
    x_out = weight * (xm - x_mean) / jnp.sqrt(x_var + eps) + bias
    return x_out * m + x * (1.0 - m), x_mean, x_var


if __name__ == "__main__":
    key = jax.random.PRNGKey(0)
    k1, k2, k3 = jax.random.split(key, 3)

    N, C, H, W = 2, 4, 16, 16
    x = jax.random.normal(k1, (N, C, H, W), dtype=jnp.float32)
    # Binary region mask, transported as int8 (exact for 0/1, 1 B/elem HBM).
    mask_bool = jax.random.uniform(k2, (N, C, H, W)) > 0.5
    mask = mask_bool.astype(jnp.int8)
    mask_f32 = mask_bool.astype(jnp.float32)

    # Deterministic init matching reset_parameters:
    # weight ~ U[0,1), bias = 0, running_mean = 0, running_var = 1.
    weight = jax.random.uniform(k3, (1, C, 1, 1), dtype=jnp.float32)
    bias = jnp.zeros((1, C, 1, 1), dtype=jnp.float32)
    running_mean = jnp.zeros((1, C, 1, 1), dtype=jnp.float32)
    running_var = jnp.ones((1, C, 1, 1), dtype=jnp.float32)

    ref_out, ref_mean, ref_var = rbn_reference(x, mask_f32, weight, bias)
    ref_rm = running_mean * 0.9 + 0.1 * ref_mean
    ref_rv = running_var * 0.9 + 0.1 * ref_var

    # Path 1: fused one-pass kernel (default).
    fwd = jax.jit(rbn_forward)
    out, rm, rv = fwd(x, mask, weight, bias, running_mean, running_var)
    jax.block_until_ready((out, rm, rv))
    assert jnp.allclose(out, ref_out, atol=1e-4, rtol=1e-4), "output mismatch"
    assert jnp.allclose(rm, ref_rm, atol=1e-5, rtol=1e-4), "running_mean mismatch"
    assert jnp.allclose(rv, ref_rv, atol=1e-5, rtol=1e-4), "running_var mismatch"

    # Path 2: two-pass sufficient-statistics fallback, forced with a tiny
    # budget so the HW grid axis really accumulates across >1 step.
    fwd_2p = jax.jit(functools.partial(rbn_forward, force_two_pass=True,
                                       block_budget_bytes=4096))
    out2, rm2, rv2 = fwd_2p(x, mask, weight, bias, running_mean, running_var)
    jax.block_until_ready((out2, rm2, rv2))
    assert jnp.allclose(out2, ref_out, atol=1e-4, rtol=1e-4), "2-pass output mismatch"
    assert jnp.allclose(rm2, ref_rm, atol=1e-5, rtol=1e-4), "2-pass running_mean mismatch"
    assert jnp.allclose(rv2, ref_rv, atol=1e-4, rtol=1e-4), "2-pass running_var mismatch"

    print("KERNEL_OK")
</pallas_src>

<mosaic_0001>
module attributes {stable_mosaic.version = 11 : i64} {
  func.func @kernel(%arg0: i32, %arg1: memref<2x4x256xf32, #tpu.memory_space<vmem>>, %arg2: memref<2x4x256xi8, #tpu.memory_space<vmem>>, %arg3: memref<4x1xf32, #tpu.memory_space<vmem>>, %arg4: memref<4x1xf32, #tpu.memory_space<vmem>>, %arg5: memref<2x4x256xf32, #tpu.memory_space<vmem>>, %arg6: memref<4x1xf32, #tpu.memory_space<vmem>>, %arg7: memref<4x1xf32, #tpu.memory_space<vmem>>) attributes {dimension_semantics = [#tpu.dimension_semantics<parallel>], iteration_bounds = array<i64: 1>, scalar_prefetch = 0 : i64, scratch_operands = 0 : i64, tpu.core_type = #tpu.core_type<tc>, window_params = [{transform_indices = @transform_0, window_bounds = array<i64: 2, 4, 256>}, {transform_indices = @transform_1, window_bounds = array<i64: 2, 4, 256>}, {transform_indices = @transform_2, window_bounds = array<i64: 4, 1>}, {transform_indices = @transform_3, window_bounds = array<i64: 4, 1>}, {transform_indices = @transform_4, window_bounds = array<i64: 2, 4, 256>}, {transform_indices = @transform_5, window_bounds = array<i64: 4, 1>}, {transform_indices = @transform_6, window_bounds = array<i64: 4, 1>}]} {
    %c0 = arith.constant 0 : index
    %c0_0 = arith.constant 0 : index
    %c0_1 = arith.constant 0 : index
    %0 = vector.load %arg1[%c0, %c0_0, %c0_1] : memref<2x4x256xf32, #tpu.memory_space<vmem>>, vector<2x4x256xf32>
    %c0_2 = arith.constant 0 : index
    %c0_3 = arith.constant 0 : index
    %c0_4 = arith.constant 0 : index
    %1 = vector.load %arg2[%c0_2, %c0_3, %c0_4] : memref<2x4x256xi8, #tpu.memory_space<vmem>>, vector<2x4x256xi8>
    %2 = arith.sitofp %1 : vector<2x4x256xi8> to vector<2x4x256xf32>
    %3 = arith.mulf %0, %2 : vector<2x4x256xf32>
    %cst = arith.constant dense<0.000000e+00> : vector<4x256xf32>
    %4 = vector.multi_reduction <add>, %2, %cst [0] : vector<2x4x256xf32> to vector<4x256xf32>
    %5 = vector.shape_cast %4 : vector<4x256xf32> to vector<1x4x256xf32>
    %cst_5 = arith.constant dense<0.000000e+00> : vector<1x4xf32>
    %6 = vector.multi_reduction <add>, %5, %cst_5 [2] : vector<1x4x256xf32> to vector<1x4xf32>
    %7 = vector.shape_cast %6 : vector<1x4xf32> to vector<1x4x1xf32>
    %cst_6 = arith.constant dense<0.000000e+00> : vector<4x256xf32>
    %8 = vector.multi_reduction <add>, %3, %cst_6 [0] : vector<2x4x256xf32> to vector<4x256xf32>
    %9 = vector.shape_cast %8 : vector<4x256xf32> to vector<1x4x256xf32>
    %cst_7 = arith.constant dense<0.000000e+00> : vector<1x4xf32>
    %10 = vector.multi_reduction <add>, %9, %cst_7 [2] : vector<1x4x256xf32> to vector<1x4xf32>
    %11 = vector.shape_cast %10 : vector<1x4xf32> to vector<1x4x1xf32>
    %12 = arith.divf %11, %7 : vector<1x4x1xf32>
    %13 = vector.broadcast %12 : vector<1x4x1xf32> to vector<2x4x256xf32>
    %14 = arith.subf %3, %13 : vector<2x4x256xf32>
    %15 = arith.mulf %14, %14 : vector<2x4x256xf32>
    %16 = arith.mulf %2, %15 : vector<2x4x256xf32>
    %cst_8 = arith.constant dense<0.000000e+00> : vector<4x256xf32>
    %17 = vector.multi_reduction <add>, %16, %cst_8 [0] : vector<2x4x256xf32> to vector<4x256xf32>
    %18 = vector.shape_cast %17 : vector<4x256xf32> to vector<1x4x256xf32>
    %cst_9 = arith.constant dense<0.000000e+00> : vector<1x4xf32>
    %19 = vector.multi_reduction <add>, %18, %cst_9 [2] : vector<1x4x256xf32> to vector<1x4xf32>
    %20 = vector.shape_cast %19 : vector<1x4xf32> to vector<1x4x1xf32>
    %21 = arith.divf %20, %7 : vector<1x4x1xf32>
    %c0_10 = arith.constant 0 : index
    %c0_11 = arith.constant 0 : index
    %22 = vector.load %arg3[%c0_10, %c0_11] : memref<4x1xf32, #tpu.memory_space<vmem>>, vector<4x1xf32>
    %23 = vector.shape_cast %22 : vector<4x1xf32> to vector<1x4x1xf32>
    %c0_12 = arith.constant 0 : index
    %c0_13 = arith.constant 0 : index
    %24 = vector.load %arg4[%c0_12, %c0_13] : memref<4x1xf32, #tpu.memory_space<vmem>>, vector<4x1xf32>
    %25 = vector.shape_cast %24 : vector<4x1xf32> to vector<1x4x1xf32>
    %cst_14 = arith.constant 9.99999974E-6 : f32
    %26 = vector.broadcast %cst_14 : f32 to vector<1x4x1xf32>
    %27 = arith.addf %21, %26 : vector<1x4x1xf32>
    %28 = math.rsqrt %27 : vector<1x4x1xf32>
    %29 = arith.mulf %23, %28 : vector<1x4x1xf32>
    %30 = vector.broadcast %29 : vector<1x4x1xf32> to vector<2x4x256xf32>
    %31 = arith.mulf %30, %14 : vector<2x4x256xf32>
    %32 = vector.broadcast %25 : vector<1x4x1xf32> to vector<2x4x256xf32>
    %33 = arith.addf %31, %32 : vector<2x4x256xf32>
    %34 = arith.subf %33, %0 : vector<2x4x256xf32>
    %35 = arith.mulf %2, %34 : vector<2x4x256xf32>
    %36 = arith.addf %0, %35 : vector<2x4x256xf32>
    %c0_15 = arith.constant 0 : index
    %c0_16 = arith.constant 0 : index
    %c0_17 = arith.constant 0 : index
    %37 = vector.load %arg5[%c0_15, %c0_16, %c0_17] : memref<2x4x256xf32, #tpu.memory_space<vmem>>, vector<2x4x256xf32>
    tpu.vector_store %arg5[%c0_15, %c0_16, %c0_17], %36 {strides = array<i32>} : memref<2x4x256xf32, #tpu.memory_space<vmem>>, vector<2x4x256xf32>,
    %38 = vector.shape_cast %12 : vector<1x4x1xf32> to vector<4x1xf32>
    %c0_18 = arith.constant 0 : index
    %c0_19 = arith.constant 0 : index
    %39 = vector.load %arg6[%c0_18, %c0_19] : memref<4x1xf32, #tpu.memory_space<vmem>>, vector<4x1xf32>
    tpu.vector_store %arg6[%c0_18, %c0_19], %38 {strides = array<i32>} : memref<4x1xf32, #tpu.memory_space<vmem>>, vector<4x1xf32>,
    %40 = vector.shape_cast %21 : vector<1x4x1xf32> to vector<4x1xf32>
    %c0_20 = arith.constant 0 : index
    %c0_21 = arith.constant 0 : index
    %41 = vector.load %arg7[%c0_20, %c0_21] : memref<4x1xf32, #tpu.memory_space<vmem>>, vector<4x1xf32>
    tpu.vector_store %arg7[%c0_20, %c0_21], %40 {strides = array<i32>} : memref<4x1xf32, #tpu.memory_space<vmem>>, vector<4x1xf32>,
    return
  }
  func.func @transform_0(%arg0: i32) -> (i32, i32, i32) {
    %c0_i32 = arith.constant 0 : i32
    %c0_i32_0 = arith.constant 0 : i32
    %c0_i32_1 = arith.constant 0 : i32
    return %c0_i32, %arg0, %c0_i32_0 : i32, i32, i32
  }
  func.func @transform_1(%arg0: i32) -> (i32, i32, i32) {
    %c0_i32 = arith.constant 0 : i32
    %c0_i32_0 = arith.constant 0 : i32
    %c0_i32_1 = arith.constant 0 : i32
    return %c0_i32, %arg0, %c0_i32_0 : i32, i32, i32
  }
  func.func @transform_2(%arg0: i32) -> (i32, i32) {
    %c0_i32 = arith.constant 0 : i32
    %c0_i32_0 = arith.constant 0 : i32
    return %arg0, %c0_i32 : i32, i32
  }
  func.func @transform_3(%arg0: i32) -> (i32, i32) {
    %c0_i32 = arith.constant 0 : i32
    %c0_i32_0 = arith.constant 0 : i32
    return %arg0, %c0_i32 : i32, i32
  }
  func.func @transform_4(%arg0: i32) -> (i32, i32, i32) {
    %c0_i32 = arith.constant 0 : i32
    %c0_i32_0 = arith.constant 0 : i32
    %c0_i32_1 = arith.constant 0 : i32
    return %c0_i32, %arg0, %c0_i32_0 : i32, i32, i32
  }
  func.func @transform_5(%arg0: i32) -> (i32, i32) {
    %c0_i32 = arith.constant 0 : i32
    %c0_i32_0 = arith.constant 0 : i32
    return %arg0, %c0_i32 : i32, i32
  }
  func.func @transform_6(%arg0: i32) -> (i32, i32) {
    %c0_i32 = arith.constant 0 : i32
    %c0_i32_0 = arith.constant 0 : i32
    return %arg0, %c0_i32 : i32, i32
  }
}

</mosaic_0001>

<llo_original>
// kernel: rbn_forward.1
$region0: #{rbn_forward.1}
  #allocation0 [shape = 'u32[]', space=smem, size = 0x4, offset = 0x4, fixed_abs, tag = 'smem constant byte address 0x4 - core index']
  #allocation1 [shape = 'u32[144,128]{1,0:T(1,128)}', space=vmem, size = 0x12000, scoped, tag = 'internal scratch']
  %s0 = inlined_call_operand.vmem [shape: f32[2,4,256], index: 0, kind: input, shape index: {}]
  %s1 = inlined_call_operand.vmem [shape: s8[2,4,256], index: 1, kind: input, shape index: {}]
  %s2 = inlined_call_operand.vmem [shape: f32[4,1], index: 2, kind: input, shape index: {}]
  %s3 = inlined_call_operand.vmem [shape: f32[4,1], index: 3, kind: input, shape index: {}]
  %s4 = inlined_call_operand.vmem [shape: f32[2,4,256], index: 4, kind: output, shape index: {0}]
  %s5 = inlined_call_operand.vmem [shape: f32[4,1], index: 5, kind: output, shape index: {1}]
  %s6 = inlined_call_operand.vmem [shape: f32[4,1], index: 6, kind: output, shape index: {2}]
  %7 = xla_tuple %s4, %s5, %s6
  %s8 = sld [smem:[#allocation0]]
  $region42: #{rbn_forward.1} parent=0
    _
  %s10 = ssub.s32 1, %s8
  %s11 = scalar_select 0, %s10, %s8
  // Predicated region
  $region2: #{rbn_forward.1} parent=0 // pred_check
    _
  $region3: #{rbn_forward.1} parent=0 // pred_check_branch
    %13 = sbr.rel (0) target = $region5
  $region4: #{rbn_forward.1} parent=0 // pred_region
    _
  $region5: #{rbn_forward.1} parent=0 // pred_fallthru
    _
  // Predicated region
  $region6: #{rbn_forward.1} parent=0 // pred_check
    _
  $region7: #{rbn_forward.1} parent=0 // pred_check_branch
    %15 = sbr.rel (0) target = $region9
  $region8: #{rbn_forward.1} parent=0 // pred_region
    _
  $region9: #{rbn_forward.1} parent=0 // pred_fallthru
    _
  // Predicated region
  $region10: #{rbn_forward.1} parent=0 // pred_check
    _
  $region11: #{rbn_forward.1} parent=0 // pred_check_branch
    %17 = sbr.rel (0) target = $region13
  $region12: #{rbn_forward.1} parent=0 // pred_region
    _
  $region13: #{rbn_forward.1} parent=0 // pred_fallthru
    _
  // Predicated region
  $region14: #{rbn_forward.1} parent=0 // pred_check
    _
  $region15: #{rbn_forward.1} parent=0 // pred_check_branch
    %19 = sbr.rel (0) target = $region17
  $region16: #{rbn_forward.1} parent=0 // pred_region
    _
  $region17: #{rbn_forward.1} parent=0 // pred_fallthru
    _
  %v20 = vld [vmem:[%s0] sm:$0xff]
  %v21 = vld [vmem:[%s0 + $0x8] sm:$0xff]
  %v22 = vld [vmem:[%s1] sm:$0x3]
  %v23 = vld [vmem:[%s1 + $0x2] sm:$0x3]
  %v24 = vunpack.c.0.s8 %v22
  %v25 = vunpack.c.0.s8 %v23
  %v26 = vcvt.s32.f32 %v24
  %v27 = vcvt.s32.f32 %v25
  %v28 = vmul.f32 %v20, %v26
  %v29 = vmul.f32 %v21, %v27
  %v32 = vcombine.high %v26, %v26
  %v33 = vcombine.high %v27, %v27
  %vm36 = vcmask 1043456
  %v37 = vsel %vm36, %v26, 0.0
  %v38 = vsel %vm36, %v27, 0.0
  %v39 = vadd.f32 %v37, %v38
  %v40 = vsel %vm36, %v32, 0.0
  %v41 = vsel %vm36, %v33, 0.0
  %v42 = vadd.f32 %v40, %v41
  %v43 = vsel %vm36, %v39, 0.0
  %v44 = vsel %vm36, %v42, 0.0
  %v45 = vadd.f32 %v43, %v44
  %46 = vadd.xlane.f32.xlu0 %v45
  %v47 = vpop.xlane.xlu0 %46
  %v50 = vcombine.high %v28, %v28
  %v51 = vcombine.high %v29, %v29
  %v54 = vsel %vm36, %v28, 0.0
  %v55 = vsel %vm36, %v29, 0.0
  %v56 = vadd.f32 %v54, %v55
  %v57 = vsel %vm36, %v50, 0.0
  %v58 = vsel %vm36, %v51, 0.0
  %v59 = vadd.f32 %v57, %v58
  %v60 = vsel %vm36, %v56, 0.0
  %v61 = vsel %vm36, %v59, 0.0
  %v62 = vadd.f32 %v60, %v61
  %63 = vadd.xlane.f32.xlu0 %v62
  %v64 = vpop.xlane.xlu0 %63
  %v65 = vrcp.pop %v47
  %v66 = vmul.f32 %v64, %v65
  %v69 = vunpack.c.l.s4 839922192
  %v70 = vunpack.c.0.s8 %v69
  %v71 = vlaneseq
  %v72 = vshrl.u32 %v71, 7
  %v73 = vsub.s32 %v70, %v72
  %v74 = vrot.slane %v66, %v73
  %v76 = vsub.f32 %v28, %v74
  %v77 = vsub.f32 %v29, %v74
  %v78 = vmul.f32 %v76, %v76
  %v79 = vmul.f32 %v77, %v77
  %v80 = vmul.f32 %v26, %v78
  %v81 = vmul.f32 %v27, %v79
  %v84 = vcombine.high %v80, %v80
  %v85 = vcombine.high %v81, %v81
  %v88 = vsel %vm36, %v80, 0.0
  %v89 = vsel %vm36, %v81, 0.0
  %v90 = vadd.f32 %v88, %v89
  %v91 = vsel %vm36, %v84, 0.0
  %v92 = vsel %vm36, %v85, 0.0
  %v93 = vadd.f32 %v91, %v92
  %v94 = vsel %vm36, %v90, 0.0
  %v95 = vsel %vm36, %v93, 0.0
  %v96 = vadd.f32 %v94, %v95
  %97 = vadd.xlane.f32.xlu0 %v96
  %v98 = vpop.xlane.xlu0 %97
  %v99 = vmul.f32 %v98, %v65
  %v100 = vld [vmem:[%s2] sm:$0xf]
  %v101 = vld [vmem:[%s3] sm:$0xf]
  %v102 = vadd.f32 %v99, 1e-05
  %v103 = vrsqrt.pop %v102
  %v104 = vmul.f32 %v100, %v103
  %106 = vset.pattern.permute.xlu0 0
  %107 = vperm.xlu0 %106, %v104
  %v108 = vpop.permute.xlu0 %107
  %v112 = vcombine.high %v76, %v76
  %v113 = vcombine.high %v77, %v77
  %v116 = vmul.f32 %v108, %v76
  %v117 = vmul.f32 %v108, %v112
  %v118 = vmul.f32 %v108, %v77
  %v119 = vmul.f32 %v108, %v113
  %121 = vset.pattern.permute.xlu0 0
  %122 = vperm.xlu0 %121, %v101
  %v123 = vpop.permute.xlu0 %122
  %v125 = vadd.f32 %v116, %v123
  %v126 = vadd.f32 %v117, %v123
  %v127 = vadd.f32 %v118, %v123
  %v128 = vadd.f32 %v119, %v123
  %v131 = vcombine.high %v20, %v20
  %v132 = vcombine.high %v21, %v21
  %v135 = vsub.f32 %v125, %v20
  %v136 = vsub.f32 %v126, %v131
  %v137 = vsub.f32 %v127, %v21
  %v138 = vsub.f32 %v128, %v132
  %v143 = vcombine.low %v135, %v136
  %v144 = vcombine.low %v137, %v138
  %v147 = vmul.f32 %v26, %v143
  %v148 = vmul.f32 %v27, %v144
  %v149 = vadd.f32 %v20, %v147
  %v150 = vadd.f32 %v21, %v148
  %151 = vst [vmem:[%s4] sm:$0xff] %v149
  %152 = vst [vmem:[%s4 + $0x8] sm:$0xff] %v150
  %vm153 = vcmask 3072
  %154 = vst.msk [vmem:[%s5] sm:$0xf] %vm153, %v66
  %155 = vst.msk [vmem:[%s6] sm:$0xf] %vm153, %v99
  // Predicated region
  $region18: #{rbn_forward.1} parent=0 // pred_check
    _
  $region19: #{rbn_forward.1} parent=0 // pred_check_branch
    %157 = sbr.rel (0) target = $region21
  $region20: #{rbn_forward.1} parent=0 // pred_region
    _
  $region21: #{rbn_forward.1} parent=0 // pred_fallthru
    _
  // Predicated region
  $region22: #{rbn_forward.1} parent=0 // pred_check
    _
  $region23: #{rbn_forward.1} parent=0 // pred_check_branch
    %159 = sbr.rel (0) target = $region25
  $region24: #{rbn_forward.1} parent=0 // pred_region
    _
  $region25: #{rbn_forward.1} parent=0 // pred_fallthru
    _
  // Predicated region
  $region26: #{rbn_forward.1} parent=0 // pred_check
    _
  $region27: #{rbn_forward.1} parent=0 // pred_check_branch
    %161 = sbr.rel (0) target = $region29
  $region28: #{rbn_forward.1} parent=0 // pred_region
    _
  $region29: #{rbn_forward.1} parent=0 // pred_fallthru
    _
  // Predicated region
  $region30: #{rbn_forward.1} parent=0 // pred_check
    _
  $region31: #{rbn_forward.1} parent=0 // pred_check_branch
    %163 = sbr.rel (0) target = $region33
  $region32: #{rbn_forward.1} parent=0 // pred_region
    _
  $region33: #{rbn_forward.1} parent=0 // pred_fallthru
    _
  // Predicated region
  $region34: #{rbn_forward.1} parent=0 // pred_check
    _
  $region35: #{rbn_forward.1} parent=0 // pred_check_branch
    %165 = sbr.rel (0) target = $region37
  $region36: #{rbn_forward.1} parent=0 // pred_region
    _
  $region37: #{rbn_forward.1} parent=0 // pred_fallthru
    _
  // Predicated region
  $region38: #{rbn_forward.1} parent=0 // pred_check
    _
  $region39: #{rbn_forward.1} parent=0 // pred_check_branch
    %167 = sbr.rel (0) target = $region41
  $region40: #{rbn_forward.1} parent=0 // pred_region
    _
  $region41: #{rbn_forward.1} parent=0 // pred_fallthru
    _

</llo_original>
